<compile_context>
chip_gen: v6e
topology: v6e:2x2x1
jax: 0.10.0
libtpu: 0.0.40
codegen_flags: <defaults>
</compile_context>

<pallas_src>
import functools

import jax
import jax.numpy as jnp
import numpy as np
from jax import lax
from jax.experimental import pallas as pl
from jax.experimental.pallas import tpu as pltpu

LANE = 128
SUBLANE = 8


def _round_up(x, m):
    return (x + m - 1) // m * m


# ------------------------------ Pallas kernels ------------------------------

def _dwconv_1x1_kernel(x_ref, w_ref, b_ref, o_ref):
    """1x1 depthwise conv = per-channel scale + bias (no halo, no scratch)."""
    x = x_ref[...].astype(jnp.float32)           # (H, W, Ct)
    tap = w_ref[0, :].astype(jnp.float32)        # (Ct,)
    bias = b_ref[0, :].astype(jnp.float32)       # (Ct,)
    o_ref[...] = (x * tap + bias).astype(o_ref.dtype)


def _dwconv_group_kernel(x_ref, w_ref, b_ref, o_ref, xpad_ref, *, K, H, W, Hs):
    """Depthwise 'same' conv for one scale group (K >= 3); channels on the lane axis.

    x_ref   : (H, W, Ct)        unpadded NHWC input block (batch dim squeezed)
    w_ref   : (K*K, Ct)         one lane vector of weights per tap
    b_ref   : (1, Ct)           bias
    o_ref   : (H, W, Ct)        output block
    xpad_ref: (Hp, Wp_pad, Ct)  halo-padded tile scratch (input dtype)
    """
    Ct = o_ref.shape[-1]
    pad = K // 2
    Hp = H + 2 * pad
    Wp = W + 2 * pad

    # Zero only the halo perimeter (cheap vs. a full-tile re-zero; interior is fully
    # overwritten every step, so this stays correct under any grid order / core split).
    zrow = jnp.zeros((pad, xpad_ref.shape[1], Ct), xpad_ref.dtype)
    xpad_ref[0:pad, :, :] = zrow
    xpad_ref[pad + H:Hp, :, :] = zrow
    zcol = jnp.zeros((H, pad, Ct), xpad_ref.dtype)
    xpad_ref[pad:pad + H, 0:pad, :] = zcol
    xpad_ref[pad:pad + H, pad + W:Wp, :] = zcol

    # Interior fill in the input dtype (no cast here; taps upcast while accumulating).
    # TODO(synk): for large tiles, turn this into a DMA into the scratch interior
    # (pltpu.make_async_copy) overlapped with the previous step instead of a vld/vst pass.
    xpad_ref[pad:pad + H, pad:pad + W, :] = x_ref[...]

    # Bias-initialized accumulator (drops the trailing "+ bias" pass). Hoisted broadcast.
    bias = jnp.broadcast_to(
        b_ref[...].astype(jnp.float32).reshape(1, 1, Ct), (Hs, W, Ct))

    n_strips = H // Hs

    def strip_body(row0):
        acc = bias
        for kw in range(K):
            # One sublane-shifted load per kw (not per tap); the kh slices below are
            # leading-dim offsets on the vreg-resident slab (no per-tap XLU/VMEM copies).
            slab = xpad_ref[pl.ds(row0, Hs + 2 * pad), kw:kw + W, :].astype(jnp.float32)
            for kh in range(K):
                tap = w_ref[kh * K + kw, :].astype(jnp.float32)
                acc = acc + slab[kh:kh + Hs] * tap
        o_ref[pl.ds(row0, Hs), :, :] = acc.astype(o_ref.dtype)

    if n_strips <= 8:
        for s in range(n_strips):            # short: statically unrolled (LLO visibility)
            strip_body(s * Hs)
    else:
        def body(s, carry):                  # long: fori_loop bounds live ranges
            strip_body(pl.multiple_of(s * Hs, Hs))
            return carry
        lax.fori_loop(0, n_strips, body, 0)


# --------------------------- Tiling / budget helpers ---------------------------

def _vmem_budgets():
    """(per-step working-set budget, vmem_limit_bytes), per TPU generation."""
    cap = 64 * 1024 * 1024
    try:
        cap = int(getattr(pltpu.get_tpu_info(), "vmem_capacity_bytes", cap))
    except Exception:
        pass
    if cap >= 100 * 1024 * 1024:                       # v5e / v6e: 128 MiB physical VMEM
        return 16 * 1024 * 1024, 96 * 1024 * 1024
    return 8 * 1024 * 1024, 48 * 1024 * 1024           # v7x: 64 MiB physical VMEM


def _pick_channel_tile(Cgp, H, W, K, itemsize, budget):
    """Largest lane-dense channel tile whose per-step working set fits the budget.

    Per channel: 1x halo scratch + 2x-buffered input block + 2x-buffered output block.
    """
    if K > 1:
        Hp = H + K - 1
        Wp_pad = _round_up(W + K - 1, SUBLANE)
        per_c = (Hp * Wp_pad + 4 * H * W + K * K + 1) * itemsize
    else:
        per_c = (4 * H * W + 2) * itemsize
    for cand in (1024, 768, 512, 384, 256, 128):
        if cand <= Cgp and Cgp % cand == 0 and cand * per_c <= budget:
            return cand
    return LANE


def _pick_row_strip(H, W, Ct, K):
    """Row-strip height that keeps acc + the shifted slab roughly vreg-resident."""
    sub_tiles = max(1, ((W + SUBLANE - 1) // SUBLANE) * ((Ct + LANE - 1) // LANE))
    cap = max(1, (40 // sub_tiles - (K - 1)) // 2)
    cap = min(cap, SUBLANE, H)
    for hs in range(cap, 0, -1):
        if H % hs == 0:
            return hs
    return 1


# ------------------------------- Group wrapper -------------------------------

def _depthwise_group_pallas(x_nhwc, w_packed, bias2d, K):
    """x_nhwc: (N, H, W, Cg); w_packed: (K*K, Cg); bias2d: (1, Cg) -> (N, H, W, Cg)."""
    N, H, W, Cg = x_nhwc.shape
    itemsize = jnp.dtype(x_nhwc.dtype).itemsize

    # Lane-dense channels: zero-pad the group to a multiple of 128 (stripped afterwards).
    Cgp = _round_up(Cg, LANE)
    if Cgp != Cg:
        x_nhwc = jnp.pad(x_nhwc, ((0, 0), (0, 0), (0, 0), (0, Cgp - Cg)))
        w_packed = jnp.pad(w_packed, ((0, 0), (0, Cgp - Cg)))
        bias2d = jnp.pad(bias2d, ((0, 0), (0, Cgp - Cg)))

    budget, vmem_limit = _vmem_budgets()
    Ct = _pick_channel_tile(Cgp, H, W, K, itemsize, budget)
    # Channel tiles on the slow grid axis -> weight/bias block index is unchanged across
    # consecutive steps (Pallas skips the re-DMA); batch on the fast axis.
    grid = (Cgp // Ct, N)
    # TODO(synk): on v7x, if N * (Cgp // Ct) is tiny, add an H-strip grid axis (with
    # overlapping manual DMA for the halo rows) so both TensorCores stay busy.

    x_spec = pl.BlockSpec((None, H, W, Ct), lambda c, n: (n, 0, 0, c))
    w_spec = pl.BlockSpec((K * K, Ct), lambda c, n: (0, c))
    b_spec = pl.BlockSpec((1, Ct), lambda c, n: (0, c))
    o_spec = pl.BlockSpec((None, H, W, Ct), lambda c, n: (n, 0, 0, c))

    if K == 1:
        kernel = _dwconv_1x1_kernel
        scratch = []
    else:
        Hs = _pick_row_strip(H, W, Ct, K)
        Hp = H + K - 1
        Wp_pad = _round_up(W + K - 1, SUBLANE)
        kernel = functools.partial(_dwconv_group_kernel, K=K, H=H, W=W, Hs=Hs)
        scratch = [pltpu.VMEM((Hp, Wp_pad, Ct), x_nhwc.dtype)]

    y = pl.pallas_call(
        kernel,
        out_shape=jax.ShapeDtypeStruct((N, H, W, Cgp), x_nhwc.dtype),
        grid_spec=pltpu.PrefetchScalarGridSpec(
            num_scalar_prefetch=0,
            grid=grid,
            in_specs=[x_spec, w_spec, b_spec],
            out_specs=o_spec,
            scratch_shapes=scratch,
        ),
        compiler_params=pltpu.CompilerParams(
            dimension_semantics=("parallel", "parallel"),
            vmem_limit_bytes=vmem_limit,
        ),
    )(x_nhwc, w_packed, bias2d)

    return y if Cgp == Cg else y[..., :Cg]


# --------------------------- Module construction ---------------------------

def make_multiscale_dwconv_params(key, dim, scale=(1, 3, 5, 7)):
    """Per-group params: weight packed as (K*K, C), bias as (1, C)."""
    n = len(scale)
    channels = []
    for i in range(n):
        if i == 0:
            channels.append(dim - dim // n * (n - 1))
        else:
            channels.append(dim // n)

    params = []
    for c, k in zip(channels, scale):
        key, kw_key, kb_key = jax.random.split(key, 3)
        fan_in = k * k                       # in_channels/groups * k * k = 1 * k * k
        bound = 1.0 / np.sqrt(fan_in)
        w = jax.random.uniform(kw_key, (c, k, k), jnp.float32, -bound, bound)
        b = jax.random.uniform(kb_key, (c,), jnp.float32, -bound, bound)
        params.append(dict(
            scale=k,
            channels=c,
            weight=jnp.transpose(w.reshape(c, k * k), (1, 0)),   # (K*K, C)
            bias=b.reshape(1, c),                                 # (1, C)
            weight_chw=w,                                         # reference only
        ))
    return params, channels


def multiscale_dwconv_forward_nhwc(x_nhwc, params):
    """x_nhwc: (N, H, W, dim). Per-group depthwise conv, concat on channels."""
    outs = []
    c0 = 0
    for p in params:
        Cg, K = p["channels"], p["scale"]
        outs.append(
            _depthwise_group_pallas(x_nhwc[..., c0:c0 + Cg], p["weight"], p["bias"], K))
        c0 += Cg
    return jnp.concatenate(outs, axis=-1)


def multiscale_dwconv_forward(x, params):
    """NCHW interface matching the PyTorch module; returns NCHW."""
    # TODO(synk): keep the surrounding model NHWC (call multiscale_dwconv_forward_nhwc)
    # to avoid these two full HBM transposes around the memory-bound small-K groups.
    x_nhwc = jnp.transpose(x, (0, 2, 3, 1))
    y = multiscale_dwconv_forward_nhwc(x_nhwc, params)
    return jnp.transpose(y, (0, 3, 1, 2))


# -------------------------------- Reference --------------------------------

def reference_forward(x, params):
    outs = []
    c0 = 0
    for p in params:
        Cg = p["channels"]
        w = p["weight_chw"][:, None, :, :]              # (C, 1, K, K) OIHW, groups=C
        y = lax.conv_general_dilated(
            x[:, c0:c0 + Cg], w, window_strides=(1, 1), padding="SAME",
            dimension_numbers=("NCHW", "OIHW", "NCHW"),
            feature_group_count=Cg, precision=lax.Precision.HIGHEST)
        outs.append(y + p["bias"].reshape(1, Cg, 1, 1))
        c0 += Cg
    return jnp.concatenate(outs, axis=1)


if __name__ == "__main__":
    key = jax.random.PRNGKey(0)
    key, xkey = jax.random.split(key)

    N, dim, H, W = 2, 8, 16, 16
    x = jax.random.normal(xkey, (N, dim, H, W), jnp.float32)

    params, channels = make_multiscale_dwconv_params(key, dim)

    out = jax.block_until_ready(multiscale_dwconv_forward(x, params))
    ref = jax.block_until_ready(reference_forward(x, params))

    assert out.shape == (N, dim, H, W)
    np.testing.assert_allclose(np.asarray(out), np.asarray(ref), atol=1e-4, rtol=1e-4)

    print("KERNEL_OK")
</pallas_src>

<mosaic_0001>
module attributes {stable_mosaic.version = 11 : i64} {
  func.func @_dwconv_1x1_kernel(%arg0: i32, %arg1: i32, %arg2: memref<1x16x16x128xf32, #tpu.memory_space<vmem>>, %arg3: memref<1x128xf32, #tpu.memory_space<vmem>>, %arg4: memref<1x128xf32, #tpu.memory_space<vmem>>, %arg5: memref<1x16x16x128xf32, #tpu.memory_space<vmem>>) attributes {dimension_semantics = [#tpu.dimension_semantics<parallel>, #tpu.dimension_semantics<parallel>], iteration_bounds = array<i64: 1, 2>, scalar_prefetch = 0 : i64, scratch_operands = 0 : i64, tpu.core_type = #tpu.core_type<tc>, window_params = [{transform_indices = @transform_0, window_bounds = array<i64: 1, 16, 16, 128>}, {transform_indices = @transform_1, window_bounds = array<i64: 1, 128>}, {transform_indices = @transform_2, window_bounds = array<i64: 1, 128>}, {transform_indices = @transform_3, window_bounds = array<i64: 1, 16, 16, 128>}]} {
    %c0 = arith.constant 0 : index
    %c0_0 = arith.constant 0 : index
    %c0_1 = arith.constant 0 : index
    %c0_2 = arith.constant 0 : index
    %0 = vector.load %arg2[%c0, %c0_0, %c0_1, %c0_2] : memref<1x16x16x128xf32, #tpu.memory_space<vmem>>, vector<1x16x16x128xf32>
    %1 = vector.shape_cast %0 : vector<1x16x16x128xf32> to vector<16x16x128xf32>
    %c0_3 = arith.constant 0 : index
    %c0_4 = arith.constant 0 : index
    %2 = vector.load %arg3[%c0_3, %c0_4] : memref<1x128xf32, #tpu.memory_space<vmem>>, vector<1x128xf32>
    %3 = vector.shape_cast %2 : vector<1x128xf32> to vector<128xf32>
    %c0_5 = arith.constant 0 : index
    %c0_6 = arith.constant 0 : index
    %4 = vector.load %arg4[%c0_5, %c0_6] : memref<1x128xf32, #tpu.memory_space<vmem>>, vector<1x128xf32>
    %5 = vector.shape_cast %4 : vector<1x128xf32> to vector<128xf32>
    %6 = vector.shape_cast %3 : vector<128xf32> to vector<1x1x128xf32>
    %7 = vector.broadcast %6 : vector<1x1x128xf32> to vector<16x16x128xf32>
    %8 = arith.mulf %1, %7 : vector<16x16x128xf32>
    %9 = vector.shape_cast %5 : vector<128xf32> to vector<1x1x128xf32>
    %10 = vector.broadcast %9 : vector<1x1x128xf32> to vector<16x16x128xf32>
    %11 = arith.addf %8, %10 : vector<16x16x128xf32>
    %c0_7 = arith.constant 0 : index
    %c0_8 = arith.constant 0 : index
    %c0_9 = arith.constant 0 : index
    %c0_10 = arith.constant 0 : index
    %12 = vector.load %arg5[%c0_7, %c0_8, %c0_9, %c0_10] : memref<1x16x16x128xf32, #tpu.memory_space<vmem>>, vector<1x16x16x128xf32>
    %13 = vector.shape_cast %12 : vector<1x16x16x128xf32> to vector<16x16x128xf32>
    %14 = vector.shape_cast %11 : vector<16x16x128xf32> to vector<1x16x16x128xf32>
    tpu.vector_store %arg5[%c0_7, %c0_8, %c0_9, %c0_10], %14 {strides = array<i32>} : memref<1x16x16x128xf32, #tpu.memory_space<vmem>>, vector<1x16x16x128xf32>,
    return
  }
  func.func @transform_0(%arg0: i32, %arg1: i32) -> (i32, i32, i32, i32) {
    %c0_i32 = arith.constant 0 : i32
    %c0_i32_0 = arith.constant 0 : i32
    %c0_i32_1 = arith.constant 0 : i32
    return %arg1, %c0_i32, %c0_i32_0, %arg0 : i32, i32, i32, i32
  }
  func.func @transform_1(%arg0: i32, %arg1: i32) -> (i32, i32) {
    %c0_i32 = arith.constant 0 : i32
    %c0_i32_0 = arith.constant 0 : i32
    return %c0_i32, %arg0 : i32, i32
  }
  func.func @transform_2(%arg0: i32, %arg1: i32) -> (i32, i32) {
    %c0_i32 = arith.constant 0 : i32
    %c0_i32_0 = arith.constant 0 : i32
    return %c0_i32, %arg0 : i32, i32
  }
  func.func @transform_3(%arg0: i32, %arg1: i32) -> (i32, i32, i32, i32) {
    %c0_i32 = arith.constant 0 : i32
    %c0_i32_0 = arith.constant 0 : i32
    %c0_i32_1 = arith.constant 0 : i32
    return %arg1, %c0_i32, %c0_i32_0, %arg0 : i32, i32, i32, i32
  }
}

</mosaic_0001>

<llo_original>
// kernel: tpu_custom_call.1
$region0: #{tpu_custom_call.1}
  #allocation0 [shape = 'u32[]', space=smem, size = 0x4, offset = 0x4, fixed_abs, tag = 'smem constant byte address 0x4 - core index']
  #allocation1 [shape = 'u32[144,128]{1,0:T(1,128)}', space=vmem, size = 0x12000, scoped, tag = 'internal scratch']
  %s0 = inlined_call_operand.hbm [shape: f32[2,16,16,128], index: 0, kind: input, shape index: {}]
  %s1 = inlined_call_operand.vmem [shape: f32[1,128], index: 1, kind: input, shape index: {}]
  %s2 = inlined_call_operand.vmem [shape: f32[1,128], index: 2, kind: input, shape index: {}]
  %s3 = inlined_call_operand.hbm [shape: f32[2,16,16,128], index: 3, kind: output, shape index: {}]
  %s4 = sld [smem:[#allocation0]]
  $region49: #{tpu_custom_call.1} parent=0
    _
  %s6 = ssub.s32 1, %s4
  %s7 = scalar_select 0, %s6, %s4
  $region1: #{tpu_custom_call.1} parent=0
    #allocation2 [shape = 'u8[262144]{0}', space=vmem, size = 0x40000, scoped, tag = 'input window, operand 0']
    #allocation3 [shape = 's32[2]{0}', space=sflag, size = 0x8, scoped, tag = 'scoped memory for tpu_custom_call.1']
    #allocation4 [shape = 's32[2]{0}', space=sflag, size = 0x8, scoped, tag = 'scoped memory for tpu_custom_call.1']
    #allocation5 [shape = 'u8[262144]{0}', space=vmem, size = 0x40000, scoped, tag = 'output window, operand 0']
    %8 = vsyncpa [#allocation3], 0
    %s9 = scalar_lea.sflag [#allocation3], 1
    %10 = vsyncpa %s9, 0
    %11 = vsyncpa [#allocation4], 0
    %s12 = scalar_lea.sflag [#allocation4], 1
    %13 = vsyncpa %s12, 0
    loop: start=0, step=1, limit=4
    $region2: #{tpu_custom_call.1} parent=1 // loop_pre_header
      _
    $region3: #{tpu_custom_call.1} parent=1 // loop_header
      %s15 = sphi 0, %s19
      %p16 = scmp.ge.s32.totalorder %s15, 4
      %s22 = sphi 0, %s34
      %s23 = sphi 0, %s30
      %s24 = sphi 0, %s22
      %s25 = sphi 0, %s23
      %s26 = sphi 0, %s24
      %s27 = sphi 0, %s25
      %s39 = sphi 0, %s41
      %s42 = sphi 0, %s39
      %s43 = sphi 0, %s42
      %s59 = sphi 0, %s43
      %s65 = sphi 0, %s67
      %s68 = sphi 0, %s65
      %s69 = sphi 0, %s68
      %s85 = sphi 0, %s69
      %s91 = sphi 0, %s93
      %s94 = sphi 0, %s91
      %s95 = sphi 0, %s94
      %s111 = sphi 0, %s95
      %s119 = sphi 0, %s121
      %s122 = sphi 0, %s119
      %s123 = sphi 0, %s122
      %s139 = sphi 0, %s123
    $region4: #{tpu_custom_call.1} parent=1 // loop_header_branch
      %18 = sbr.rel (%p16) target = $region8
    $region5: #{tpu_custom_call.1} parent=1 // loop_body
      %s20 = ssub.s32 %s15, 1
      %s21 = ssub.s32 %s15, 2
      %s28 = sadd.s32 1, %s23
      %p29 = scmp.ge.s32.totalorder %s28, 2
      %s30 = scalar_select %p29, 0, %s28
      %s31 = sadd.s32 1, %s22
      %s32 = scalar_select %p29, %s31, %s22
      %p33 = scmp.ge.s32.totalorder %s32, 1
      %s34 = scalar_select %p33, 0, %s32
      %s35 = ssub.s32 %s23, %s30
      %s36 = ssub.s32 %s22, %s34
      %s37 = sor.u32 %s35, %s36
      %p38 = scmp.eq.s32.totalorder %s37, 0
      %s40 = sadd.s32 %s39, 1
      %s41 = scalar_select %p38, %s39, %s40
      %p44 = pneg %p38
      %p45 = scmp.eq.s32.totalorder %s15, 1
      %p46 = por %p44, %p45
      %p47 = scmp.ne.s32.totalorder %s39, %s42
      %p48 = scmp.eq.s32.totalorder %s15, 0
      %p49 = por %p47, %p48
      %p50 = scmp.ne.s32.totalorder %s39, %s42
      %p51 = scmp.eq.s32.totalorder %s20, 1
      %p52 = por %p50, %p51
      %p53 = scmp.ne.s32.totalorder %s42, %s43
      %p54 = scmp.eq.s32.totalorder %s20, 0
      %p55 = por %p53, %p54
      %p56 = scmp.ne.s32.totalorder %s42, %s43
      %p57 = scmp.eq.s32.totalorder %s21, 1
      %p58 = por %p56, %p57
      %p60 = scmp.ne.s32.totalorder %s43, %s59
      %p61 = scmp.eq.s32.totalorder %s21, 0
      %p62 = por %p60, %p61
      %s63 = ssub.s32 %s22, %s34
      %p64 = scmp.eq.s32.totalorder %s63, 0
      %s66 = sadd.s32 %s65, 1
      %s67 = scalar_select %p64, %s65, %s66
      %p70 = pneg %p64
      %p71 = scmp.eq.s32.totalorder %s15, 1
      %p72 = por %p70, %p71
      %p73 = scmp.ne.s32.totalorder %s65, %s68
      %p74 = scmp.eq.s32.totalorder %s15, 0
      %p75 = por %p73, %p74
      %p76 = scmp.ne.s32.totalorder %s65, %s68
      %p77 = scmp.eq.s32.totalorder %s20, 1
      %p78 = por %p76, %p77
      %p79 = scmp.ne.s32.totalorder %s68, %s69
      %p80 = scmp.eq.s32.totalorder %s20, 0
      %p81 = por %p79, %p80
      %p82 = scmp.ne.s32.totalorder %s68, %s69
      %p83 = scmp.eq.s32.totalorder %s21, 1
      %p84 = por %p82, %p83
      %p86 = scmp.ne.s32.totalorder %s69, %s85
      %p87 = scmp.eq.s32.totalorder %s21, 0
      %p88 = por %p86, %p87
      %s89 = ssub.s32 %s22, %s34
      %p90 = scmp.eq.s32.totalorder %s89, 0
      %s92 = sadd.s32 %s91, 1
      %s93 = scalar_select %p90, %s91, %s92
      %p96 = pneg %p90
      %p97 = scmp.eq.s32.totalorder %s15, 1
      %p98 = por %p96, %p97
      %p99 = scmp.ne.s32.totalorder %s91, %s94
      %p100 = scmp.eq.s32.totalorder %s15, 0
      %p101 = por %p99, %p100
      %p102 = scmp.ne.s32.totalorder %s91, %s94
      %p103 = scmp.eq.s32.totalorder %s20, 1
      %p104 = por %p102, %p103
      %p105 = scmp.ne.s32.totalorder %s94, %s95
      %p106 = scmp.eq.s32.totalorder %s20, 0
      %p107 = por %p105, %p106
      %p108 = scmp.ne.s32.totalorder %s94, %s95
      %p109 = scmp.eq.s32.totalorder %s21, 1
      %p110 = por %p108, %p109
      %p112 = scmp.ne.s32.totalorder %s95, %s111
      %p113 = scmp.eq.s32.totalorder %s21, 0
      %p114 = por %p112, %p113
      %s115 = ssub.s32 %s23, %s30
      %s116 = ssub.s32 %s22, %s34
      %s117 = sor.u32 %s115, %s116
      %p118 = scmp.eq.s32.totalorder %s117, 0
      %s120 = sadd.s32 %s119, 1
      %s121 = scalar_select %p118, %s119, %s120
      %p124 = pneg %p118
      %p125 = scmp.eq.s32.totalorder %s15, 1
      %p126 = por %p124, %p125
      %p127 = scmp.ne.s32.totalorder %s119, %s122
      %p128 = scmp.eq.s32.totalorder %s15, 0
      %p129 = por %p127, %p128
      %p130 = scmp.ne.s32.totalorder %s119, %s122
      %p131 = scmp.eq.s32.totalorder %s20, 1
      %p132 = por %p130, %p131
      %p133 = scmp.ne.s32.totalorder %s122, %s123
      %p134 = scmp.eq.s32.totalorder %s20, 0
      %p135 = por %p133, %p134
      %p136 = scmp.ne.s32.totalorder %s122, %s123
      %p137 = scmp.eq.s32.totalorder %s21, 1
      %p138 = por %p136, %p137
      %p140 = scmp.ne.s32.totalorder %s123, %s139
      %p141 = scmp.eq.s32.totalorder %s21, 0
      %p142 = por %p140, %p141
      %p143 = scmp.le.s32.totalorder 1, %s15
      %p144 = scmp.lt.s32.totalorder %s15, 3
      %p145 = pnand %p143, %p144
      %p146 = pneg %p145
      // Predicated region
      $region9: #{tpu_custom_call.1} parent=5 // pred_check
        _
      $region10: #{tpu_custom_call.1} parent=5 // pred_check_branch
        %148 = sbr.rel (%p145) target = $region12
      $region11: #{tpu_custom_call.1} parent=5 // pred_region
        %s149 = ssub.s32 %s15, 1
        // Predicated region
        $region13: #{tpu_custom_call.1} parent=11 // pred_check
          %p150 = pneg %p81
        $region14: #{tpu_custom_call.1} parent=11 // pred_check_branch
          %152 = sbr.rel (%p150) target = $region16
        $region15: #{tpu_custom_call.1} parent=11 // pred_region
          %p153 = scmp.lt.s32.totalorder %s24, 0
          %s154 = scalar_select %p153, %s24, 0
          %s155 = scalar_lea.vmem %s1, %s154
        $region16: #{tpu_custom_call.1} parent=11 // pred_fallthru
          _
        // Predicated region
        $region17: #{tpu_custom_call.1} parent=11 // pred_check
          %p156 = pneg %p107
        $region18: #{tpu_custom_call.1} parent=11 // pred_check_branch
          %158 = sbr.rel (%p156) target = $region20
        $region19: #{tpu_custom_call.1} parent=11 // pred_region
          %p159 = scmp.lt.s32.totalorder %s24, 0
          %s160 = scalar_select %p159, %s24, 0
          %s161 = scalar_lea.vmem %s2, %s160
        $region20: #{tpu_custom_call.1} parent=11 // pred_fallthru
          _
      $region12: #{tpu_custom_call.1} parent=5 // pred_fallthru
        _
      %p162 = scmp.lt.s32.totalorder %s15, 2
      // Predicated region
      $region21: #{tpu_custom_call.1} parent=5 // pred_check
        %p163 = pneg %p162
      $region22: #{tpu_custom_call.1} parent=5 // pred_check_branch
        %165 = sbr.rel (%p163) target = $region24
      $region23: #{tpu_custom_call.1} parent=5 // pred_region
        // Predicated region
        $region25: #{tpu_custom_call.1} parent=23 // pred_check
          %p166 = pneg %p49
        $region26: #{tpu_custom_call.1} parent=23 // pred_check_branch
          %168 = sbr.rel (%p166) target = $region28
        $region27: #{tpu_custom_call.1} parent=23 // pred_region
          %s169 = sand.u32 %s39, 1
          %s170 = scalar_lea.sflag [#allocation3], %s169
          %s171 = sand.u32 %s39, 1
          %s172 = smul.addr %s171, 256
          %s173 = scalar_lea.vmem [#allocation2], %s172
          %s175 = ssub.s32 4096, 4096
          %176 = vsyncadd %s170, %s175
          %s177 = smul.addr %s23, 32
          %s178 = sadd.s32 %s22, %s177
          %s179 = smul.addr %s178, 128
          %s180 = scalar_lea.hbm %s0, %s179
          %s181 = sshll.u32 %s173, 4
          %s182 = int_to_ptr.vmem [resolvable:$true] %s181
          %187 = dma.hbm_to_vmem [thread:$0]  %s180, 4096, %s182, %s170, 128, 128, 8
        $region28: #{tpu_custom_call.1} parent=23 // pred_fallthru
          _
      $region24: #{tpu_custom_call.1} parent=5 // pred_fallthru
        _
      %p188 = scmp.le.s32.totalorder 1, %s15
      %p189 = scmp.lt.s32.totalorder %s15, 3
      %p190 = pnand %p188, %p189
      %p191 = pneg %p190
      // Predicated region
      $region29: #{tpu_custom_call.1} parent=5 // pred_check
        _
      $region30: #{tpu_custom_call.1} parent=5 // pred_check_branch
        %193 = sbr.rel (%p190) target = $region32
      $region31: #{tpu_custom_call.1} parent=5 // pred_region
        %s194 = ssub.s32 %s15, 1
        %s195 = sand.u32 %s42, 1
        %s196 = scalar_lea.sflag [#allocation3], %s195
        %s197 = sand.u32 %s42, 1
        %s198 = smul.addr %s197, 256
        %s199 = scalar_lea.vmem [#allocation2], %s198
        // Predicated region
        $region33: #{tpu_custom_call.1} parent=31 // pred_check
          %p200 = pneg %p55
        $region34: #{tpu_custom_call.1} parent=31 // pred_check_branch
          %202 = sbr.rel (%p200) target = $region36
        $region35: #{tpu_custom_call.1} parent=31 // pred_region
          %203 = dma.done %s196, 4096
        $region36: #{tpu_custom_call.1} parent=31 // pred_fallthru
          _
        %s204 = sand.u32 %s42, 1
        %s205 = scalar_lea.sflag [#allocation3], %s204
        %s206 = sand.u32 %s42, 1
        %s207 = smul.addr %s206, 256
        %s208 = scalar_lea.vmem [#allocation2], %s207
        %p209 = pneg %p55
        %p210 = pneg %p52
        %p211 = scmp.lt.s32.totalorder %s24, 0
        %s212 = scalar_select %p211, %s24, 0
        %s213 = scalar_lea.vmem %s1, %s212
        %p214 = pneg %p81
        %p215 = pneg %p78
        %p216 = scmp.lt.s32.totalorder %s24, 0
        %s217 = scalar_select %p216, %s24, 0
        %s218 = scalar_lea.vmem %s2, %s217
        %p219 = pneg %p107
        %p220 = pneg %p104
        %p221 = pneg %p135
        %p222 = pneg %p132
        %s223 = sand.u32 %s122, 1
        %s224 = scalar_lea.sflag [#allocation4], %s223
        %s225 = sand.u32 %s122, 1
        %s226 = smul.addr %s225, 256
        %s227 = scalar_lea.vmem [#allocation5], %s226
        %p228 = scmp.lt.s32.totalorder %s24, 0
        %s229 = scalar_select %p228, %s24, 0
        %s230 = scalar_lea.vmem %s1, %s229
        %p231 = scmp.lt.s32.totalorder %s24, 0
        %s232 = scalar_select %p231, %s24, 0
        %s233 = scalar_lea.vmem %s2, %s232
        %v234 = vld [vmem:[%s199] sm:$0xff]
        %v235 = vld [vmem:[%s199 + $0x8] sm:$0xff]
        %v236 = vld [vmem:[%s199 + $0x10] sm:$0xff]
        %v237 = vld [vmem:[%s199 + $0x18] sm:$0xff]
        %v238 = vld [vmem:[%s199 + $0x20] sm:$0xff]
        %v239 = vld [vmem:[%s199 + $0x28] sm:$0xff]
        %v240 = vld [vmem:[%s199 + $0x30] sm:$0xff]
        %v241 = vld [vmem:[%s199 + $0x38] sm:$0xff]
        %v242 = vld [vmem:[%s199 + $0x40] sm:$0xff]
        %v243 = vld [vmem:[%s199 + $0x48] sm:$0xff]
        %v244 = vld [vmem:[%s199 + $0x50] sm:$0xff]
        %v245 = vld [vmem:[%s199 + $0x58] sm:$0xff]
        %v246 = vld [vmem:[%s199 + $0x60] sm:$0xff]
        %v247 = vld [vmem:[%s199 + $0x68] sm:$0xff]
        %v248 = vld [vmem:[%s199 + $0x70] sm:$0xff]
        %v249 = vld [vmem:[%s199 + $0x78] sm:$0xff]
        %v250 = vld [vmem:[%s199 + $0x80] sm:$0xff]
        %v251 = vld [vmem:[%s199 + $0x88] sm:$0xff]
        %v252 = vld [vmem:[%s199 + $0x90] sm:$0xff]
        %v253 = vld [vmem:[%s199 + $0x98] sm:$0xff]
        %v254 = vld [vmem:[%s199 + $0xa0] sm:$0xff]
        %v255 = vld [vmem:[%s199 + $0xa8] sm:$0xff]
        %v256 = vld [vmem:[%s199 + $0xb0] sm:$0xff]
        %v257 = vld [vmem:[%s199 + $0xb8] sm:$0xff]
        %v258 = vld [vmem:[%s199 + $0xc0] sm:$0xff]
        %v259 = vld [vmem:[%s199 + $0xc8] sm:$0xff]
        %v260 = vld [vmem:[%s199 + $0xd0] sm:$0xff]
        %v261 = vld [vmem:[%s199 + $0xd8] sm:$0xff]
        %v262 = vld [vmem:[%s199 + $0xe0] sm:$0xff]
        %v263 = vld [vmem:[%s199 + $0xe8] sm:$0xff]
        %v264 = vld [vmem:[%s199 + $0xf0] sm:$0xff]
        %v265 = vld [vmem:[%s199 + $0xf8] sm:$0xff]
        %v266 = vld [vmem:[%s230] sm:$0x1]
        %v267 = vld [vmem:[%s233] sm:$0x1]
        %v269 = vlaneseq
        %v270 = vshrl.u32 %v269, 7
        %v271 = vsub.s32 0, %v270
        %v272 = vrot.slane %v266, %v271
        %v274 = vmul.f32 %v234, %v272
        %v275 = vmul.f32 %v235, %v272
        %v276 = vmul.f32 %v236, %v272
        %v277 = vmul.f32 %v237, %v272
        %v278 = vmul.f32 %v238, %v272
        %v279 = vmul.f32 %v239, %v272
        %v280 = vmul.f32 %v240, %v272
        %v281 = vmul.f32 %v241, %v272
        %v282 = vmul.f32 %v242, %v272
        %v283 = vmul.f32 %v243, %v272
        %v284 = vmul.f32 %v244, %v272
        %v285 = vmul.f32 %v245, %v272
        %v286 = vmul.f32 %v246, %v272
        %v287 = vmul.f32 %v247, %v272
        %v288 = vmul.f32 %v248, %v272
        %v289 = vmul.f32 %v249, %v272
        %v290 = vmul.f32 %v250, %v272
        %v291 = vmul.f32 %v251, %v272
        %v292 = vmul.f32 %v252, %v272
        %v293 = vmul.f32 %v253, %v272
        %v294 = vmul.f32 %v254, %v272
        %v295 = vmul.f32 %v255, %v272
        %v296 = vmul.f32 %v256, %v272
        %v297 = vmul.f32 %v257, %v272
        %v298 = vmul.f32 %v258, %v272
        %v299 = vmul.f32 %v259, %v272
        %v300 = vmul.f32 %v260, %v272
        %v301 = vmul.f32 %v261, %v272
        %v302 = vmul.f32 %v262, %v272
        %v303 = vmul.f32 %v263, %v272
        %v304 = vmul.f32 %v264, %v272
        %v305 = vmul.f32 %v265, %v272
        %v307 = vlaneseq
        %v308 = vshrl.u32 %v307, 7
        %v309 = vsub.s32 0, %v308
        %v310 = vrot.slane %v267, %v309
        %v312 = vadd.f32 %v274, %v310
        %v313 = vadd.f32 %v275, %v310
        %v314 = vadd.f32 %v276, %v310
        %v315 = vadd.f32 %v277, %v310
        %v316 = vadd.f32 %v278, %v310
        %v317 = vadd.f32 %v279, %v310
        %v318 = vadd.f32 %v280, %v310
        %v319 = vadd.f32 %v281, %v310
        %v320 = vadd.f32 %v282, %v310
        %v321 = vadd.f32 %v283, %v310
        %v322 = vadd.f32 %v284, %v310
        %v323 = vadd.f32 %v285, %v310
        %v324 = vadd.f32 %v286, %v310
        %v325 = vadd.f32 %v287, %v310
        %v326 = vadd.f32 %v288, %v310
        %v327 = vadd.f32 %v289, %v310
        %v328 = vadd.f32 %v290, %v310
        %v329 = vadd.f32 %v291, %v310
        %v330 = vadd.f32 %v292, %v310
        %v331 = vadd.f32 %v293, %v310
        %v332 = vadd.f32 %v294, %v310
        %v333 = vadd.f32 %v295, %v310
        %v334 = vadd.f32 %v296, %v310
        %v335 = vadd.f32 %v297, %v310
        %v336 = vadd.f32 %v298, %v310
        %v337 = vadd.f32 %v299, %v310
        %v338 = vadd.f32 %v300, %v310
        %v339 = vadd.f32 %v301, %v310
        %v340 = vadd.f32 %v302, %v310
        %v341 = vadd.f32 %v303, %v310
        %v342 = vadd.f32 %v304, %v310
        %v343 = vadd.f32 %v305, %v310
        %344 = vst [vmem:[%s227] sm:$0xff] %v312
        %345 = vst [vmem:[%s227 + $0x8] sm:$0xff] %v313
        %346 = vst [vmem:[%s227 + $0x10] sm:$0xff] %v314
        %347 = vst [vmem:[%s227 + $0x18] sm:$0xff] %v315
        %348 = vst [vmem:[%s227 + $0x20] sm:$0xff] %v316
        %349 = vst [vmem:[%s227 + $0x28] sm:$0xff] %v317
        %350 = vst [vmem:[%s227 + $0x30] sm:$0xff] %v318
        %351 = vst [vmem:[%s227 + $0x38] sm:$0xff] %v319
        %352 = vst [vmem:[%s227 + $0x40] sm:$0xff] %v320
        %353 = vst [vmem:[%s227 + $0x48] sm:$0xff] %v321
        %354 = vst [vmem:[%s227 + $0x50] sm:$0xff] %v322
        %355 = vst [vmem:[%s227 + $0x58] sm:$0xff] %v323
        %356 = vst [vmem:[%s227 + $0x60] sm:$0xff] %v324
        %357 = vst [vmem:[%s227 + $0x68] sm:$0xff] %v325
        %358 = vst [vmem:[%s227 + $0x70] sm:$0xff] %v326
        %359 = vst [vmem:[%s227 + $0x78] sm:$0xff] %v327
        %360 = vst [vmem:[%s227 + $0x80] sm:$0xff] %v328
        %361 = vst [vmem:[%s227 + $0x88] sm:$0xff] %v329
        %362 = vst [vmem:[%s227 + $0x90] sm:$0xff] %v330
        %363 = vst [vmem:[%s227 + $0x98] sm:$0xff] %v331
        %364 = vst [vmem:[%s227 + $0xa0] sm:$0xff] %v332
        %365 = vst [vmem:[%s227 + $0xa8] sm:$0xff] %v333
        %366 = vst [vmem:[%s227 + $0xb0] sm:$0xff] %v334
        %367 = vst [vmem:[%s227 + $0xb8] sm:$0xff] %v335
        %368 = vst [vmem:[%s227 + $0xc0] sm:$0xff] %v336
        %369 = vst [vmem:[%s227 + $0xc8] sm:$0xff] %v337
        %370 = vst [vmem:[%s227 + $0xd0] sm:$0xff] %v338
        %371 = vst [vmem:[%s227 + $0xd8] sm:$0xff] %v339
        %372 = vst [vmem:[%s227 + $0xe0] sm:$0xff] %v340
        %373 = vst [vmem:[%s227 + $0xe8] sm:$0xff] %v341
        %374 = vst [vmem:[%s227 + $0xf0] sm:$0xff] %v342
        %375 = vst [vmem:[%s227 + $0xf8] sm:$0xff] %v343
        %s376 = sand.u32 %s122, 1
        %s377 = scalar_lea.sflag [#allocation4], %s376
        %s378 = sand.u32 %s122, 1
        %s379 = smul.addr %s378, 256
        %s380 = scalar_lea.vmem [#allocation5], %s379
        // Predicated region
        $region37: #{tpu_custom_call.1} parent=31 // pred_check
          %p381 = pneg %p132
        $region38: #{tpu_custom_call.1} parent=31 // pred_check_branch
          %383 = sbr.rel (%p381) target = $region40
        $region39: #{tpu_custom_call.1} parent=31 // pred_region
          %s385 = ssub.s32 4096, 4096
          %386 = vsyncadd %s377, %s385
          %s387 = smul.addr %s25, 32
          %s388 = sadd.s32 %s24, %s387
          %s389 = smul.addr %s388, 128
          %s390 = scalar_lea.hbm %s3, %s389
          %s391 = sshll.u32 %s380, 4
          %s392 = int_to_ptr.vmem [resolvable:$true] %s391
          %397 = dma.vmem_to_hbm [thread:$0]  %s392, 4096, %s390, %s377, 128, 128, 8
        $region40: #{tpu_custom_call.1} parent=31 // pred_fallthru
          _
      $region32: #{tpu_custom_call.1} parent=5 // pred_fallthru
        _
      %p398 = scmp.le.s32.totalorder 2, %s15
      // Predicated region
      $region41: #{tpu_custom_call.1} parent=5 // pred_check
        %p399 = pneg %p398
      $region42: #{tpu_custom_call.1} parent=5 // pred_check_branch
        %401 = sbr.rel (%p399) target = $region44
      $region43: #{tpu_custom_call.1} parent=5 // pred_region
        %s402 = ssub.s32 %s15, 2
        // Predicated region
        $region45: #{tpu_custom_call.1} parent=43 // pred_check
          %p403 = pneg %p138
        $region46: #{tpu_custom_call.1} parent=43 // pred_check_branch
          %405 = sbr.rel (%p403) target = $region48
        $region47: #{tpu_custom_call.1} parent=43 // pred_region
          %s406 = sand.u32 %s123, 1
          %s407 = scalar_lea.sflag [#allocation4], %s406
          %s408 = sand.u32 %s123, 1
          %s409 = smul.addr %s408, 256
          %s410 = scalar_lea.vmem [#allocation5], %s409
          %411 = dma.done %s407, 4096
        $region48: #{tpu_custom_call.1} parent=43 // pred_fallthru
          _
      $region44: #{tpu_custom_call.1} parent=5 // pred_fallthru
        _
    $region6: #{tpu_custom_call.1} parent=1 // loop_footer
      %s19 = sadd.s32 1, %s15
    $region7: #{tpu_custom_call.1} parent=1 // loop_footer_branch
      %14 = sbr.rel target = $region3
    $region8: #{tpu_custom_call.1} parent=1 // loop_exit
      _
    %412 = vsyncpa [#allocation3], 1
    %s413 = scalar_lea.sflag [#allocation3], 1
    %414 = vsyncpa %s413, 1
    %415 = vsyncpa [#allocation4], 1
    %s416 = scalar_lea.sflag [#allocation4], 1
    %417 = vsyncpa %s416, 1

</llo_original>
